<compile_context>
chip_gen: v7x
topology: tpu7x:2x2x1
jax: 0.10.0
libtpu: 0.0.40
codegen_flags: <defaults>
</compile_context>

<pallas_src>
import functools

import jax
import jax.numpy as jnp
from jax.experimental import pallas as pl
from jax.experimental.pallas import tpu as pltpu

IN_F = 19
HID_F = 38
OUT_F = 19
BN_EPS = 1e-5


def _round_up(x, m):
    return -(-x // m) * m


def _seg_nn_kernel(x_ref, w1_ref, b1_ref, w2_ref, b2_ref, out_ref):
    """One batch tile in native (batch, features) layout.

    BatchNorm is already folded into (w1, b1) by the wrapper, so the body is
    just matmul -> bias + ReLU -> matmul -> bias, all in f32 regardless of the
    streaming dtype of x.

    NOTE: with the ragged pl.cdiv grid, the last tile may contain rows past the
    real batch holding unspecified data.  That is harmless ONLY because every
    output row depends solely on its own input row (no cross-row reduction in
    this kernel) — do not add one without reinstating explicit masking.
    """
    x = x_ref[...].astype(jnp.float32)                              # (TB, 19)

    # Linear(19 -> 38) + bias + ReLU  (f32 MXU accumulation)
    h = jnp.dot(x, w1_ref[...], preferred_element_type=jnp.float32)
    h = jnp.maximum(h + b1_ref[...], 0.0)                           # (TB, 38)

    # Linear(38 -> 19) + bias
    out = jnp.dot(h, w2_ref[...], preferred_element_type=jnp.float32)
    out_ref[...] = (out + b2_ref[...]).astype(out_ref.dtype)        # (TB, 19)


def segmentation_nn(x, gamma, beta, w1, b1, w2, b2, *,
                    block_batch=8192, out_dtype=jnp.float32):
    """Fused forward pass of SegmentationNN.

    x: (N, 19) in the PyTorch (batch, features) convention; any float dtype
       (the kernel streams x in that dtype and computes in f32).
    Returns (N, 19) in `out_dtype` (default float32).

    BatchNorm uses training-mode batch statistics (biased variance); running
    statistics are not updated.
    """
    n = x.shape[0]

    # ---- Global BatchNorm statistics: one fused f32 pass over x. -----------
    # Single-pass E[x^2] - E[x]^2 (f32 accumulation) so x is read once; clamp
    # guards against tiny negative round-off.
    xf = x.astype(jnp.float32)               # fuses into the reductions
    mean = jnp.mean(xf, axis=0)                                       # (19,)
    var = jnp.maximum(jnp.mean(xf * xf, axis=0) - mean * mean, 0.0)   # biased

    scale = gamma.reshape(-1) * jax.lax.rsqrt(var + BN_EPS)           # (19,)
    shift = beta.reshape(-1) - mean * scale                           # (19,)

    # ---- Fold BN affine into the first Linear (kept in f32). ---------------
    # (x*scale + shift) @ w1 + b1  ==  x @ (scale[:,None]*w1) + (shift@w1 + b1)
    w1_eff = (scale[:, None] * w1).astype(jnp.float32)                # (19, 38)
    b1_eff = (shift @ w1 + b1.reshape(-1)).astype(jnp.float32)        # (38,)
    b1c = b1_eff.reshape(1, HID_F)
    w2f = w2.astype(jnp.float32)                                      # (38, 19)
    b2c = b2.reshape(1, OUT_F).astype(jnp.float32)

    # ---- Batch tile: as large as VMEM allows, capped to the batch. ---------
    tb = max(128, min(_round_up(int(block_batch), 128), _round_up(n, 128)))
    grid = (pl.cdiv(n, tb),)

    # VMEM budget: a (tb, <=128)-wide f32 block lane-pads to 128 lanes ->
    # 512*tb bytes per buffer; in/out are double-buffered plus a few f32
    # temporaries ((tb,38) hidden etc.).  8*per_buf + 8 MiB is comfortable;
    # capped at 60 MiB so it stays under v7x's 64 MiB physical per-TC VMEM
    # (v5e/v6e have 128 MiB physical, so overriding their scoped default is
    # always safe).
    per_buf = tb * 128 * 4
    vmem_limit = int(max(32 << 20, min(8 * per_buf + (8 << 20), 60 << 20)))

    x_bytes = n * IN_F * x.dtype.itemsize
    out_bytes = n * OUT_F * jnp.dtype(out_dtype).itemsize
    w_bytes = (IN_F * HID_F + HID_F + HID_F * OUT_F + OUT_F) * 4
    cost = pl.CostEstimate(
        flops=2 * n * (IN_F * HID_F + HID_F * OUT_F),
        transcendentals=0,
        bytes_accessed=x_bytes + out_bytes + w_bytes)

    return pl.pallas_call(
        _seg_nn_kernel,
        out_shape=jax.ShapeDtypeStruct((n, OUT_F), out_dtype),
        grid=grid,
        in_specs=[
            # activations: tiled over the batch (sublane) axis, auto-pipelined
            pl.BlockSpec((tb, IN_F), lambda i: (i, 0)),
            # weights / biases: constant block index -> fetched once
            pl.BlockSpec((IN_F, HID_F), lambda i: (0, 0)),
            pl.BlockSpec((1, HID_F), lambda i: (0, 0)),
            pl.BlockSpec((HID_F, OUT_F), lambda i: (0, 0)),
            pl.BlockSpec((1, OUT_F), lambda i: (0, 0)),
        ],
        out_specs=pl.BlockSpec((tb, OUT_F), lambda i: (i, 0)),
        compiler_params=pltpu.CompilerParams(
            dimension_semantics=("parallel",),   # v7x: shard steps across TCs
            vmem_limit_bytes=vmem_limit),
        cost_estimate=cost,
    )(x, w1_eff, b1c, w2f, b2c)


def init_params(key):
    """Deterministic parameter init mirroring PyTorch defaults.

    BatchNorm1d: weight=1, bias=0.
    Linear: weight, bias ~ U(-1/sqrt(fan_in), 1/sqrt(fan_in)); weights stored
    transposed ((in, out)) so the math is x @ W.
    """
    k1, k2, k3, k4 = jax.random.split(key, 4)

    gamma = jnp.ones((1, IN_F), jnp.float32)
    beta = jnp.zeros((1, IN_F), jnp.float32)

    bound1 = 1.0 / jnp.sqrt(float(IN_F))
    w1 = jax.random.uniform(k1, (IN_F, HID_F), jnp.float32, -bound1, bound1)
    b1 = jax.random.uniform(k2, (1, HID_F), jnp.float32, -bound1, bound1)

    bound2 = 1.0 / jnp.sqrt(float(HID_F))
    w2 = jax.random.uniform(k3, (HID_F, OUT_F), jnp.float32, -bound2, bound2)
    b2 = jax.random.uniform(k4, (1, OUT_F), jnp.float32, -bound2, bound2)

    return gamma, beta, w1, b1, w2, b2


def reference(x, gamma, beta, w1, b1, w2, b2):
    """Pure-JAX reference faithful to the PyTorch forward (training-mode BN)."""
    x = x.astype(jnp.float32)
    mean = jnp.mean(x, axis=0, keepdims=True)
    var = jnp.mean((x - mean) ** 2, axis=0, keepdims=True)
    xn = (x - mean) / jnp.sqrt(var + BN_EPS) * gamma + beta
    h = jnp.maximum(xn @ w1 + b1, 0.0)
    return h @ w2 + b2


if __name__ == "__main__":
    key = jax.random.PRNGKey(0)
    kx, kp = jax.random.split(key)

    batch = 300   # deliberately NOT a multiple of the tile (ragged last block)
    x = jax.random.normal(kx, (batch, IN_F), jnp.float32)
    params = init_params(kp)

    ref = reference(x, *params)

    # Default path: large auto-capped tile, f32 streaming + f32 compute.
    fwd = jax.jit(segmentation_nn)
    out = jax.block_until_ready(fwd(x, *params))
    assert out.shape == (batch, OUT_F)
    assert jnp.allclose(out, ref, atol=1e-4, rtol=1e-4), "f32 mismatch vs reference"

    # Small-tile path: exercises a multi-step grid with a ragged partial block.
    fwd_small = jax.jit(functools.partial(segmentation_nn, block_batch=128))
    out_small = jax.block_until_ready(fwd_small(x, *params))
    assert jnp.allclose(out_small, ref, atol=1e-4, rtol=1e-4), "tiled mismatch vs reference"

    # bf16 activation-streaming path (halves the dominant HBM read on v6e/v7x);
    # weights stay f32, compute stays f32.
    out_bf16 = jax.block_until_ready(fwd(x.astype(jnp.bfloat16), *params))
    assert out_bf16.shape == (batch, OUT_F)
    assert jnp.allclose(out_bf16, ref, atol=5e-2, rtol=5e-2), "bf16 mismatch vs reference"

    print("KERNEL_OK")
</pallas_src>

<mosaic_0001>
module attributes {stable_mosaic.version = 11 : i64} {
  func.func @_seg_nn_kernel(%arg0: i32, %arg1: memref<384x19xf32, #tpu.memory_space<vmem>>, %arg2: memref<19x38xf32, #tpu.memory_space<vmem>>, %arg3: memref<1x38xf32, #tpu.memory_space<vmem>>, %arg4: memref<38x19xf32, #tpu.memory_space<vmem>>, %arg5: memref<1x19xf32, #tpu.memory_space<vmem>>, %arg6: memref<384x19xf32, #tpu.memory_space<vmem>>) attributes {dimension_semantics = [#tpu.dimension_semantics<parallel>], iteration_bounds = array<i64: 1>, scalar_prefetch = 0 : i64, scratch_operands = 0 : i64, tpu.core_type = #tpu.core_type<tc>, window_params = [{transform_indices = @transform_0, window_bounds = array<i64: 384, 19>}, {pipeline_mode = #tpu.pipeline_mode<synchronous>, transform_indices = @transform_1, window_bounds = array<i64: 19, 38>}, {pipeline_mode = #tpu.pipeline_mode<synchronous>, transform_indices = @transform_2, window_bounds = array<i64: 1, 38>}, {pipeline_mode = #tpu.pipeline_mode<synchronous>, transform_indices = @transform_3, window_bounds = array<i64: 38, 19>}, {pipeline_mode = #tpu.pipeline_mode<synchronous>, transform_indices = @transform_4, window_bounds = array<i64: 1, 19>}, {transform_indices = @transform_5, window_bounds = array<i64: 384, 19>}]} {
    %c0 = arith.constant 0 : index
    %c0_0 = arith.constant 0 : index
    %0 = vector.load %arg1[%c0, %c0_0] : memref<384x19xf32, #tpu.memory_space<vmem>>, vector<384x19xf32>
    %c0_1 = arith.constant 0 : index
    %c0_2 = arith.constant 0 : index
    %1 = vector.load %arg2[%c0_1, %c0_2] : memref<19x38xf32, #tpu.memory_space<vmem>>, vector<19x38xf32>
    %cst = arith.constant dense<0.000000e+00> : vector<384x38xf32>
    %2 = tpu.matmul %0, %1, %cst {dimension_numbers = #tpu.dot_dimension_numbers<[1], [0], [0], [1], [0, 0, 1, 1], [], []>} : vector<384x19xf32>, vector<19x38xf32>, vector<384x38xf32> -> vector<384x38xf32>
    %c0_3 = arith.constant 0 : index
    %c0_4 = arith.constant 0 : index
    %3 = vector.load %arg3[%c0_3, %c0_4] : memref<1x38xf32, #tpu.memory_space<vmem>>, vector<1x38xf32>
    %4 = vector.broadcast %3 : vector<1x38xf32> to vector<384x38xf32>
    %5 = arith.addf %2, %4 : vector<384x38xf32>
    %cst_5 = arith.constant 0.000000e+00 : f32
    %6 = vector.broadcast %cst_5 : f32 to vector<384x38xf32>
    %7 = arith.maximumf %5, %6 : vector<384x38xf32>
    %c0_6 = arith.constant 0 : index
    %c0_7 = arith.constant 0 : index
    %8 = vector.load %arg4[%c0_6, %c0_7] : memref<38x19xf32, #tpu.memory_space<vmem>>, vector<38x19xf32>
    %cst_8 = arith.constant dense<0.000000e+00> : vector<384x19xf32>
    %9 = tpu.matmul %7, %8, %cst_8 {dimension_numbers = #tpu.dot_dimension_numbers<[1], [0], [0], [1], [0, 0, 1, 1], [], []>} : vector<384x38xf32>, vector<38x19xf32>, vector<384x19xf32> -> vector<384x19xf32>
    %c0_9 = arith.constant 0 : index
    %c0_10 = arith.constant 0 : index
    %10 = vector.load %arg5[%c0_9, %c0_10] : memref<1x19xf32, #tpu.memory_space<vmem>>, vector<1x19xf32>
    %11 = vector.broadcast %10 : vector<1x19xf32> to vector<384x19xf32>
    %12 = arith.addf %9, %11 : vector<384x19xf32>
    %c0_11 = arith.constant 0 : index
    %c0_12 = arith.constant 0 : index
    %13 = vector.load %arg6[%c0_11, %c0_12] : memref<384x19xf32, #tpu.memory_space<vmem>>, vector<384x19xf32>
    tpu.vector_store %arg6[%c0_11, %c0_12], %12 {strides = array<i32>} : memref<384x19xf32, #tpu.memory_space<vmem>>, vector<384x19xf32>,
    return
  }
  func.func @transform_0(%arg0: i32) -> (i32, i32) {
    %c0_i32 = arith.constant 0 : i32
    %c0_i32_0 = arith.constant 0 : i32
    return %arg0, %c0_i32 : i32, i32
  }
  func.func @transform_1(%arg0: i32) -> (i32, i32) {
    %c0_i32 = arith.constant 0 : i32
    %c0_i32_0 = arith.constant 0 : i32
    %c0_i32_1 = arith.constant 0 : i32
    return %c0_i32, %c0_i32_0 : i32, i32
  }
  func.func @transform_2(%arg0: i32) -> (i32, i32) {
    %c0_i32 = arith.constant 0 : i32
    %c0_i32_0 = arith.constant 0 : i32
    %c0_i32_1 = arith.constant 0 : i32
    return %c0_i32, %c0_i32_0 : i32, i32
  }
  func.func @transform_3(%arg0: i32) -> (i32, i32) {
    %c0_i32 = arith.constant 0 : i32
    %c0_i32_0 = arith.constant 0 : i32
    %c0_i32_1 = arith.constant 0 : i32
    return %c0_i32, %c0_i32_0 : i32, i32
  }
  func.func @transform_4(%arg0: i32) -> (i32, i32) {
    %c0_i32 = arith.constant 0 : i32
    %c0_i32_0 = arith.constant 0 : i32
    %c0_i32_1 = arith.constant 0 : i32
    return %c0_i32, %c0_i32_0 : i32, i32
  }
  func.func @transform_5(%arg0: i32) -> (i32, i32) {
    %c0_i32 = arith.constant 0 : i32
    %c0_i32_0 = arith.constant 0 : i32
    return %arg0, %c0_i32 : i32, i32
  }
}

</mosaic_0001>

<llo_original>
// kernel: segmentation_nn.1
$region0: #{segmentation_nn.1}
  #allocation0 [shape = 'u32[]', space=smem, size = 0x4, offset = 0x4, fixed_abs, tag = 'smem constant byte address 0x4 - core index']
  #allocation1 [shape = 'u32[144,128]{1,0:T(1,128)}', space=vmem, size = 0x12000, scoped, tag = 'internal scratch']
  %s0 = inlined_call_operand.vmem [shape: f32[300,19], index: 0, kind: input, shape index: {}]
  %s1 = inlined_call_operand.vmem [shape: f32[19,38], index: 1, kind: input, shape index: {}]
  %s2 = inlined_call_operand.vmem [shape: f32[1,38], index: 2, kind: input, shape index: {}]
  %s3 = inlined_call_operand.vmem [shape: f32[38,19], index: 3, kind: input, shape index: {}]
  %s4 = inlined_call_operand.vmem [shape: f32[1,19], index: 4, kind: input, shape index: {}]
  %s5 = inlined_call_operand.vmem [shape: f32[300,19], index: 5, kind: output, shape index: {}]
  %s6 = sld [smem:[#allocation0]]
  $region64: #{segmentation_nn.1} parent=0
    _
  %s8 = ssub.s32 1, %s6
  %s9 = scalar_select 0, %s8, %s6
  $region1: #{segmentation_nn.1} parent=0
    #allocation2 [shape = 'u8[196608]{0}', space=vmem, size = 0x30000, scoped, tag = 'output window, operand 0, single buffered']
    // Predicated region
    $region2: #{segmentation_nn.1} parent=1 // pred_check
      _
    $region3: #{segmentation_nn.1} parent=1 // pred_check_branch
      %11 = sbr.rel (0) target = $region5
    $region4: #{segmentation_nn.1} parent=1 // pred_region
      _
    $region5: #{segmentation_nn.1} parent=1 // pred_fallthru
      _
    // Predicated region
    $region6: #{segmentation_nn.1} parent=1 // pred_check
      _
    $region7: #{segmentation_nn.1} parent=1 // pred_check_branch
      %13 = sbr.rel (0) target = $region9
    $region8: #{segmentation_nn.1} parent=1 // pred_region
      _
    $region9: #{segmentation_nn.1} parent=1 // pred_fallthru
      _
    // Predicated region
    $region10: #{segmentation_nn.1} parent=1 // pred_check
      _
    $region11: #{segmentation_nn.1} parent=1 // pred_check_branch
      %15 = sbr.rel (0) target = $region13
    $region12: #{segmentation_nn.1} parent=1 // pred_region
      _
    $region13: #{segmentation_nn.1} parent=1 // pred_fallthru
      _
    // Predicated region
    $region14: #{segmentation_nn.1} parent=1 // pred_check
      _
    $region15: #{segmentation_nn.1} parent=1 // pred_check_branch
      %17 = sbr.rel (0) target = $region17
    $region16: #{segmentation_nn.1} parent=1 // pred_region
      _
    $region17: #{segmentation_nn.1} parent=1 // pred_fallthru
      _
    // Predicated region
    $region18: #{segmentation_nn.1} parent=1 // pred_check
      _
    $region19: #{segmentation_nn.1} parent=1 // pred_check_branch
      %19 = sbr.rel (0) target = $region21
    $region20: #{segmentation_nn.1} parent=1 // pred_region
      _
    $region21: #{segmentation_nn.1} parent=1 // pred_fallthru
      _
    %v20 = vld [vmem:[%s0] sm:$0xff]
    %v21 = vld [vmem:[%s0 + $0x8] sm:$0xff]
    %v22 = vld [vmem:[%s0 + $0x10] sm:$0xff]
    %v23 = vld [vmem:[%s0 + $0x18] sm:$0xff]
    %v24 = vld [vmem:[%s0 + $0x20] sm:$0xff]
    %v25 = vld [vmem:[%s0 + $0x28] sm:$0xff]
    %v26 = vld [vmem:[%s0 + $0x30] sm:$0xff]
    %v27 = vld [vmem:[%s0 + $0x38] sm:$0xff]
    %v28 = vld [vmem:[%s0 + $0x40] sm:$0xff]
    %v29 = vld [vmem:[%s0 + $0x48] sm:$0xff]
    %v30 = vld [vmem:[%s0 + $0x50] sm:$0xff]
    %v31 = vld [vmem:[%s0 + $0x58] sm:$0xff]
    %v32 = vld [vmem:[%s0 + $0x60] sm:$0xff]
    %v33 = vld [vmem:[%s0 + $0x68] sm:$0xff]
    %v34 = vld [vmem:[%s0 + $0x70] sm:$0xff]
    %v35 = vld [vmem:[%s0 + $0x78] sm:$0xff]
    %v36 = vld [vmem:[%s0 + $0x80] sm:$0xff]
    %v37 = vld [vmem:[%s0 + $0x88] sm:$0xff]
    %v38 = vld [vmem:[%s0 + $0x90] sm:$0xff]
    %v39 = vld [vmem:[%s0 + $0x98] sm:$0xff]
    %v40 = vld [vmem:[%s0 + $0xa0] sm:$0xff]
    %v41 = vld [vmem:[%s0 + $0xa8] sm:$0xff]
    %v42 = vld [vmem:[%s0 + $0xb0] sm:$0xff]
    %v43 = vld [vmem:[%s0 + $0xb8] sm:$0xff]
    %v44 = vld [vmem:[%s0 + $0xc0] sm:$0xff]
    %v45 = vld [vmem:[%s0 + $0xc8] sm:$0xff]
    %v46 = vld [vmem:[%s0 + $0xd0] sm:$0xff]
    %v47 = vld [vmem:[%s0 + $0xd8] sm:$0xff]
    %v48 = vld [vmem:[%s0 + $0xe0] sm:$0xff]
    %v49 = vld [vmem:[%s0 + $0xe8] sm:$0xff]
    %v50 = vld [vmem:[%s0 + $0xf0] sm:$0xff]
    %v51 = vld [vmem:[%s0 + $0xf8] sm:$0xff]
    %v52 = vld [vmem:[%s0 + $0x100] sm:$0xff]
    %v53 = vld [vmem:[%s0 + $0x108] sm:$0xff]
    %v54 = vld [vmem:[%s0 + $0x110] sm:$0xff]
    %v55 = vld [vmem:[%s0 + $0x118] sm:$0xff]
    %v56 = vld [vmem:[%s0 + $0x120] sm:$0xff]
    %v57 = vld [vmem:[%s0 + $0x128] sm:$0xff]
    %v58 = vld [vmem:[%s0 + $0x130] sm:$0xff]
    %v59 = vld [vmem:[%s0 + $0x138] sm:$0xff]
    %v60 = vld [vmem:[%s0 + $0x140] sm:$0xff]
    %v61 = vld [vmem:[%s0 + $0x148] sm:$0xff]
    %v62 = vld [vmem:[%s0 + $0x150] sm:$0xff]
    %v63 = vld [vmem:[%s0 + $0x158] sm:$0xff]
    %v64 = vld [vmem:[%s0 + $0x160] sm:$0xff]
    %v65 = vld [vmem:[%s0 + $0x168] sm:$0xff]
    %v66 = vld [vmem:[%s0 + $0x170] sm:$0xff]
    %v67 = vld [vmem:[%s0 + $0x178] sm:$0xff]
    %v68 = vld [vmem:[%s1] sm:$0xff]
    %v69 = vld [vmem:[%s1 + $0x8] sm:$0xff]
    %v70 = vld [vmem:[%s1 + $0x10] sm:$0x7]
    %v71 = vld [vmem:[%s2] sm:$0x1]
    %v73 = vlaneseq
    %v74 = vshrl.u32 %v73, 7
    %v75 = vsub.s32 0, %v74
    %v76 = vrot.slane %v71, %v75
    %vm78 = vcmask 154624
    %v80 = vsel %vm78, %v20, 0
    %v83 = vsel %vm78, %v21, 0
    %v86 = vsel %vm78, %v22, 0
    %v89 = vsel %vm78, %v23, 0
    %v92 = vsel %vm78, %v24, 0
    %v95 = vsel %vm78, %v25, 0
    %v98 = vsel %vm78, %v26, 0
    %v101 = vsel %vm78, %v27, 0
    %v104 = vsel %vm78, %v28, 0
    %v107 = vsel %vm78, %v29, 0
    %v110 = vsel %vm78, %v30, 0
    %v113 = vsel %vm78, %v31, 0
    %v116 = vsel %vm78, %v32, 0
    %v119 = vsel %vm78, %v33, 0
    %v122 = vsel %vm78, %v34, 0
    %v125 = vsel %vm78, %v35, 0
    %v128 = vsel %vm78, %v36, 0
    %v131 = vsel %vm78, %v37, 0
    %v134 = vsel %vm78, %v38, 0
    %v137 = vsel %vm78, %v39, 0
    %v140 = vsel %vm78, %v40, 0
    %v143 = vsel %vm78, %v41, 0
    %v146 = vsel %vm78, %v42, 0
    %v149 = vsel %vm78, %v43, 0
    %v152 = vsel %vm78, %v44, 0
    %v155 = vsel %vm78, %v45, 0
    %v158 = vsel %vm78, %v46, 0
    %v161 = vsel %vm78, %v47, 0
    %v164 = vsel %vm78, %v48, 0
    %v167 = vsel %vm78, %v49, 0
    %v170 = vsel %vm78, %v50, 0
    %v173 = vsel %vm78, %v51, 0
    %v176 = vsel %vm78, %v52, 0
    %v179 = vsel %vm78, %v53, 0
    %v182 = vsel %vm78, %v54, 0
    %v185 = vsel %vm78, %v55, 0
    %v188 = vsel %vm78, %v56, 0
    %v191 = vsel %vm78, %v57, 0
    %v194 = vsel %vm78, %v58, 0
    %v197 = vsel %vm78, %v59, 0
    %v200 = vsel %vm78, %v60, 0
    %v203 = vsel %vm78, %v61, 0
    %v206 = vsel %vm78, %v62, 0
    %v209 = vsel %vm78, %v63, 0
    %v212 = vsel %vm78, %v64, 0
    %v215 = vsel %vm78, %v65, 0
    %v218 = vsel %vm78, %v66, 0
    %v221 = vsel %vm78, %v67, 0
    %vm223 = vcmask 1042432
    %v225 = vsel %vm223, %v70, 0
    %227 = vmatprep.subr.mxu0 0.0
    %228 = vmatpush1.msra.mxu0 %v68
    %229 = vmatprep.subr.mxu0 0.0
    %230 = vmatpush1.msra.mxu0 %v69
    %231 = vmatprep.subr.mxu0 0.0
    %232 = vmatpush1.msra.mxu0 %v225
    %233 = vmatprep.subr.mxu0 0.0
    %234 = vmatpush1.msra.mxu0 0.0
    %235 = vmatprep.subr.mxu0 0.0
    %236 = vmatpush1.msra.mxu0 0.0
    %237 = vmatprep.subr.mxu0 0.0
    %238 = vmatpush1.msra.mxu0 0.0
    %239 = vmatprep.subr.mxu0 0.0
    %240 = vmatpush1.msra.mxu0 0.0
    %241 = vmatprep.subr.mxu0 0.0
    %242 = vmatpush1.msra.mxu0 0.0
    %243 = vmatprep.subr.mxu0 0.0
    %244 = vmatpush1.msra.mxu0 0.0
    %245 = vmatprep.subr.mxu0 0.0
    %246 = vmatpush1.msra.mxu0 0.0
    %247 = vmatprep.subr.mxu0 0.0
    %248 = vmatpush1.msra.mxu0 0.0
    %249 = vmatprep.subr.mxu0 0.0
    %250 = vmatpush1.msra.mxu0 0.0
    %251 = vmatprep.subr.mxu0 0.0
    %252 = vmatpush1.msra.mxu0 0.0
    %253 = vmatprep.subr.mxu0 0.0
    %254 = vmatpush1.msra.mxu0 0.0
    %255 = vmatprep.subr.mxu0 0.0
    %256 = vmatpush1.msra.mxu0 0.0
    %257 = vmatprep.subr.mxu0 0.0
    %258 = vmatpush1.msra.mxu0 0.0
    %259 = vmatprep.subr.mxu0 0.0
    %260 = vmatpush1.msra.mxu0 0.0
    %261 = vmatprep.subr.mxu0 0.0
    %262 = vmatpush1.msra.mxu0 0.0
    %263 = vmatprep.subr.mxu0 0.0
    %264 = vmatpush1.msra.mxu0 0.0
    %265 = vmatprep.subr.mxu0 0.0
    %266 = vmatpush1.msra.mxu0 0.0
    %267 = vmatprep.subr.mxu0 0.0
    %268 = vmatpush1.msra.mxu0 0.0
    %269 = vmatprep.subr.mxu0 0.0
    %270 = vmatpush1.msra.mxu0 0.0
    %271 = vmatprep.subr.mxu0 0.0
    %272 = vmatpush1.msra.mxu0 0.0
    %273 = vmatprep.subr.mxu0 0.0
    %274 = vmatpush1.msra.mxu0 0.0
    %275 = vmatprep.subr.mxu0 0.0
    %276 = vmatpush1.msra.mxu0 0.0
    %277 = vmatprep.subr.mxu0 0.0
    %278 = vmatpush1.msra.mxu0 0.0
    %279 = vmatprep.subr.mxu0 0.0
    %280 = vmatpush1.msra.mxu0 0.0
    %281 = vmatprep.subr.mxu0 0.0
    %282 = vmatpush1.msra.mxu0 0.0
    %283 = vmatprep.subr.mxu0 0.0
    %284 = vmatpush1.msra.mxu0 0.0
    %285 = vmatprep.subr.mxu0 0.0
    %286 = vmatpush1.msra.mxu0 0.0
    %287 = vmatprep.subr.mxu0 0.0
    %288 = vmatpush1.msra.mxu0 0.0
    %289 = vmatprep.subr.mxu0 0.0
    %290 = vmatpush1.msra.mxu0 0.0
    %291 = vmatprep.mubr.f32.mxu0 0.0
    %292 = vmatmul.mubr.f32.gmra.mrb[0].mxu0 %v80
    %v293 = vpop.f32.mrb[0].mxu0
    %v294 = vadd.f32 %v76, %v293
    %v295 = vpop.f32.mrb[0].mxu0
    %296 = vmatprep.mubr.f32.mxu0 0.0
    %297 = vmatmul.mubr.f32.gmra.mrb[0].mxu0 %v83
    %v298 = vpop.f32.mrb[0].mxu0
    %v299 = vadd.f32 %v76, %v298
    %v300 = vpop.f32.mrb[0].mxu0
    %301 = vmatprep.mubr.f32.mxu0 0.0
    %302 = vmatmul.mubr.f32.gmra.mrb[0].mxu0 %v86
    %v303 = vpop.f32.mrb[0].mxu0
    %v304 = vadd.f32 %v76, %v303
    %v305 = vpop.f32.mrb[0].mxu0
    %306 = vmatprep.mubr.f32.mxu0 0.0
    %307 = vmatmul.mubr.f32.gmra.mrb[0].mxu0 %v89
    %v308 = vpop.f32.mrb[0].mxu0
    %v309 = vadd.f32 %v76, %v308
    %v310 = vpop.f32.mrb[0].mxu0
    %311 = vmatprep.mubr.f32.mxu0 0.0
    %312 = vmatmul.mubr.f32.gmra.mrb[0].mxu0 %v92
    %v313 = vpop.f32.mrb[0].mxu0
    %v314 = vadd.f32 %v76, %v313
    %v315 = vpop.f32.mrb[0].mxu0
    %316 = vmatprep.mubr.f32.mxu0 0.0
    %317 = vmatmul.mubr.f32.gmra.mrb[0].mxu0 %v95
    %v318 = vpop.f32.mrb[0].mxu0
    %v319 = vadd.f32 %v76, %v318
    %v320 = vpop.f32.mrb[0].mxu0
    %321 = vmatprep.mubr.f32.mxu0 0.0
    %322 = vmatmul.mubr.f32.gmra.mrb[0].mxu0 %v98
    %v323 = vpop.f32.mrb[0].mxu0
    %v324 = vadd.f32 %v76, %v323
    %v325 = vpop.f32.mrb[0].mxu0
    %326 = vmatprep.mubr.f32.mxu0 0.0
    %327 = vmatmul.mubr.f32.gmra.mrb[0].mxu0 %v101
    %v328 = vpop.f32.mrb[0].mxu0
    %v329 = vadd.f32 %v76, %v328
    %v330 = vpop.f32.mrb[0].mxu0
    %331 = vmatprep.mubr.f32.mxu0 0.0
    %332 = vmatmul.mubr.f32.gmra.mrb[0].mxu0 %v104
    %v333 = vpop.f32.mrb[0].mxu0
    %v334 = vadd.f32 %v76, %v333
    %v335 = vpop.f32.mrb[0].mxu0
    %336 = vmatprep.mubr.f32.mxu0 0.0
    %337 = vmatmul.mubr.f32.gmra.mrb[0].mxu0 %v107
    %v338 = vpop.f32.mrb[0].mxu0
    %v339 = vadd.f32 %v76, %v338
    %v340 = vpop.f32.mrb[0].mxu0
    %341 = vmatprep.mubr.f32.mxu0 0.0
    %342 = vmatmul.mubr.f32.gmra.mrb[0].mxu0 %v110
    %v343 = vpop.f32.mrb[0].mxu0
    %v344 = vadd.f32 %v76, %v343
    %v345 = vpop.f32.mrb[0].mxu0
    %346 = vmatprep.mubr.f32.mxu0 0.0
    %347 = vmatmul.mubr.f32.gmra.mrb[0].mxu0 %v113
    %v348 = vpop.f32.mrb[0].mxu0
    %v349 = vadd.f32 %v76, %v348
    %v350 = vpop.f32.mrb[0].mxu0
    %351 = vmatprep.mubr.f32.mxu0 0.0
    %352 = vmatmul.mubr.f32.gmra.mrb[0].mxu0 %v116
    %v353 = vpop.f32.mrb[0].mxu0
    %v354 = vadd.f32 %v76, %v353
    %v355 = vpop.f32.mrb[0].mxu0
    %356 = vmatprep.mubr.f32.mxu0 0.0
    %357 = vmatmul.mubr.f32.gmra.mrb[0].mxu0 %v119
    %v358 = vpop.f32.mrb[0].mxu0
    %v359 = vadd.f32 %v76, %v358
    %v360 = vpop.f32.mrb[0].mxu0
    %361 = vmatprep.mubr.f32.mxu0 0.0
    %362 = vmatmul.mubr.f32.gmra.mrb[0].mxu0 %v122
    %v363 = vpop.f32.mrb[0].mxu0
    %v364 = vadd.f32 %v76, %v363
    %v365 = vpop.f32.mrb[0].mxu0
    %366 = vmatprep.mubr.f32.mxu0 0.0
    %367 = vmatmul.mubr.f32.gmra.mrb[0].mxu0 %v125
    %v368 = vpop.f32.mrb[0].mxu0
    %v369 = vadd.f32 %v76, %v368
    %v370 = vpop.f32.mrb[0].mxu0
    %371 = vmatprep.mubr.f32.mxu0 0.0
    %372 = vmatmul.mubr.f32.gmra.mrb[0].mxu0 %v128
    %v373 = vpop.f32.mrb[0].mxu0
    %v374 = vadd.f32 %v76, %v373
    %v375 = vpop.f32.mrb[0].mxu0
    %376 = vmatprep.mubr.f32.mxu0 0.0
    %377 = vmatmul.mubr.f32.gmra.mrb[0].mxu0 %v131
    %v378 = vpop.f32.mrb[0].mxu0
    %v379 = vadd.f32 %v76, %v378
    %v380 = vpop.f32.mrb[0].mxu0
    %381 = vmatprep.mubr.f32.mxu0 0.0
    %382 = vmatmul.mubr.f32.gmra.mrb[0].mxu0 %v134
    %v383 = vpop.f32.mrb[0].mxu0
    %v384 = vadd.f32 %v76, %v383
    %v385 = vpop.f32.mrb[0].mxu0
    %386 = vmatprep.mubr.f32.mxu0 0.0
    %387 = vmatmul.mubr.f32.gmra.mrb[0].mxu0 %v137
    %v388 = vpop.f32.mrb[0].mxu0
    %v389 = vadd.f32 %v76, %v388
    %v390 = vpop.f32.mrb[0].mxu0
    %391 = vmatprep.mubr.f32.mxu0 0.0
    %392 = vmatmul.mubr.f32.gmra.mrb[0].mxu0 %v140
    %v393 = vpop.f32.mrb[0].mxu0
    %v394 = vadd.f32 %v76, %v393
    %v395 = vpop.f32.mrb[0].mxu0
    %396 = vmatprep.mubr.f32.mxu0 0.0
    %397 = vmatmul.mubr.f32.gmra.mrb[0].mxu0 %v143
    %v398 = vpop.f32.mrb[0].mxu0
    %v399 = vadd.f32 %v76, %v398
    %v400 = vpop.f32.mrb[0].mxu0
    %401 = vmatprep.mubr.f32.mxu0 0.0
    %402 = vmatmul.mubr.f32.gmra.mrb[0].mxu0 %v146
    %v403 = vpop.f32.mrb[0].mxu0
    %v404 = vadd.f32 %v76, %v403
    %v405 = vpop.f32.mrb[0].mxu0
    %406 = vmatprep.mubr.f32.mxu0 0.0
    %407 = vmatmul.mubr.f32.gmra.mrb[0].mxu0 %v149
    %v408 = vpop.f32.mrb[0].mxu0
    %v409 = vadd.f32 %v76, %v408
    %v410 = vpop.f32.mrb[0].mxu0
    %411 = vmatprep.mubr.f32.mxu0 0.0
    %412 = vmatmul.mubr.f32.gmra.mrb[0].mxu0 %v152
    %v413 = vpop.f32.mrb[0].mxu0
    %v414 = vadd.f32 %v76, %v413
    %v415 = vpop.f32.mrb[0].mxu0
    %416 = vmatprep.mubr.f32.mxu0 0.0
    %417 = vmatmul.mubr.f32.gmra.mrb[0].mxu0 %v155
    %v418 = vpop.f32.mrb[0].mxu0
    %v419 = vadd.f32 %v76, %v418
    %v420 = vpop.f32.mrb[0].mxu0
    %421 = vmatprep.mubr.f32.mxu0 0.0
    %422 = vmatmul.mubr.f32.gmra.mrb[0].mxu0 %v158
    %v423 = vpop.f32.mrb[0].mxu0
    %v424 = vadd.f32 %v76, %v423
    %v425 = vpop.f32.mrb[0].mxu0
    %426 = vmatprep.mubr.f32.mxu0 0.0
    %427 = vmatmul.mubr.f32.gmra.mrb[0].mxu0 %v161
    %v428 = vpop.f32.mrb[0].mxu0
    %v429 = vadd.f32 %v76, %v428
    %v430 = vpop.f32.mrb[0].mxu0
    %431 = vmatprep.mubr.f32.mxu0 0.0
    %432 = vmatmul.mubr.f32.gmra.mrb[0].mxu0 %v164
    %v433 = vpop.f32.mrb[0].mxu0
    %v434 = vadd.f32 %v76, %v433
    %v435 = vpop.f32.mrb[0].mxu0
    %436 = vmatprep.mubr.f32.mxu0 0.0
    %437 = vmatmul.mubr.f32.gmra.mrb[0].mxu0 %v167
    %v438 = vpop.f32.mrb[0].mxu0
    %v439 = vadd.f32 %v76, %v438
    %v440 = vpop.f32.mrb[0].mxu0
    %441 = vmatprep.mubr.f32.mxu0 0.0
    %442 = vmatmul.mubr.f32.gmra.mrb[0].mxu0 %v170
    %v443 = vpop.f32.mrb[0].mxu0
    %v444 = vadd.f32 %v76, %v443
    %v445 = vpop.f32.mrb[0].mxu0
    %446 = vmatprep.mubr.f32.mxu0 0.0
    %447 = vmatmul.mubr.f32.gmra.mrb[0].mxu0 %v173
    %v448 = vpop.f32.mrb[0].mxu0
    %v449 = vadd.f32 %v76, %v448
    %v450 = vpop.f32.mrb[0].mxu0
    %451 = vmatprep.mubr.f32.mxu0 0.0
    %452 = vmatmul.mubr.f32.gmra.mrb[0].mxu0 %v176
    %v453 = vpop.f32.mrb[0].mxu0
    %v454 = vadd.f32 %v76, %v453
    %v455 = vpop.f32.mrb[0].mxu0
    %456 = vmatprep.mubr.f32.mxu0 0.0
    %457 = vmatmul.mubr.f32.gmra.mrb[0].mxu0 %v179
    %v458 = vpop.f32.mrb[0].mxu0
    %v459 = vadd.f32 %v76, %v458
    %v460 = vpop.f32.mrb[0].mxu0
    %461 = vmatprep.mubr.f32.mxu0 0.0
    %462 = vmatmul.mubr.f32.gmra.mrb[0].mxu0 %v182
    %v463 = vpop.f32.mrb[0].mxu0
    %v464 = vadd.f32 %v76, %v463
    %v465 = vpop.f32.mrb[0].mxu0
    %466 = vmatprep.mubr.f32.mxu0 0.0
    %467 = vmatmul.mubr.f32.gmra.mrb[0].mxu0 %v185
    %v468 = vpop.f32.mrb[0].mxu0
    %v469 = vadd.f32 %v76, %v468
    %v470 = vpop.f32.mrb[0].mxu0
    %471 = vmatprep.mubr.f32.mxu0 0.0
    %472 = vmatmul.mubr.f32.gmra.mrb[0].mxu0 %v188
    %v473 = vpop.f32.mrb[0].mxu0
    %v474 = vadd.f32 %v76, %v473
    %v475 = vpop.f32.mrb[0].mxu0
    %476 = vmatprep.mubr.f32.mxu0 0.0
    %477 = vmatmul.mubr.f32.gmra.mrb[0].mxu0 %v191
    %v478 = vpop.f32.mrb[0].mxu0
    %v479 = vadd.f32 %v76, %v478
    %v480 = vpop.f32.mrb[0].mxu0
    %481 = vmatprep.mubr.f32.mxu0 0.0
    %482 = vmatmul.mubr.f32.gmra.mrb[0].mxu0 %v194
    %v483 = vpop.f32.mrb[0].mxu0
    %v484 = vadd.f32 %v76, %v483
    %v485 = vpop.f32.mrb[0].mxu0
    %486 = vmatprep.mubr.f32.mxu0 0.0
    %487 = vmatmul.mubr.f32.gmra.mrb[0].mxu0 %v197
    %v488 = vpop.f32.mrb[0].mxu0
    %v489 = vadd.f32 %v76, %v488
    %v490 = vpop.f32.mrb[0].mxu0
    %491 = vmatprep.mubr.f32.mxu0 0.0
    %492 = vmatmul.mubr.f32.gmra.mrb[0].mxu0 %v200
    %v493 = vpop.f32.mrb[0].mxu0
    %v494 = vadd.f32 %v76, %v493
    %v495 = vpop.f32.mrb[0].mxu0
    %496 = vmatprep.mubr.f32.mxu0 0.0
    %497 = vmatmul.mubr.f32.gmra.mrb[0].mxu0 %v203
    %v498 = vpop.f32.mrb[0].mxu0
    %v499 = vadd.f32 %v76, %v498
    %v500 = vpop.f32.mrb[0].mxu0
    %501 = vmatprep.mubr.f32.mxu0 0.0
    %502 = vmatmul.mubr.f32.gmra.mrb[0].mxu0 %v206
    %v503 = vpop.f32.mrb[0].mxu0
    %v504 = vadd.f32 %v76, %v503
    %v505 = vpop.f32.mrb[0].mxu0
    %506 = vmatprep.mubr.f32.mxu0 0.0
    %507 = vmatmul.mubr.f32.gmra.mrb[0].mxu0 %v209
    %v508 = vpop.f32.mrb[0].mxu0
    %v509 = vadd.f32 %v76, %v508
    %v510 = vpop.f32.mrb[0].mxu0
    %511 = vmatprep.mubr.f32.mxu0 0.0
    %512 = vmatmul.mubr.f32.gmra.mrb[0].mxu0 %v212
    %v513 = vpop.f32.mrb[0].mxu0
    %v514 = vadd.f32 %v76, %v513
    %v515 = vpop.f32.mrb[0].mxu0
    %516 = vmatprep.mubr.f32.mxu0 0.0
    %517 = vmatmul.mubr.f32.gmra.mrb[0].mxu0 %v215
    %v518 = vpop.f32.mrb[0].mxu0
    %v519 = vadd.f32 %v76, %v518
    %v520 = vpop.f32.mrb[0].mxu0
    %521 = vmatprep.mubr.f32.mxu0 0.0
    %522 = vmatmul.mubr.f32.gmra.mrb[0].mxu0 %v218
    %v523 = vpop.f32.mrb[0].mxu0
    %v524 = vadd.f32 %v76, %v523
    %v525 = vpop.f32.mrb[0].mxu0
    %526 = vmatprep.mubr.f32.mxu0 0.0
    %527 = vmatmul.mubr.f32.gmra.mrb[0].mxu0 %v221
    %v528 = vpop.f32.mrb[0].mxu0
    %v529 = vadd.f32 %v76, %v528
    %v530 = vpop.f32.mrb[0].mxu0
    %531 = vdwg.mxu0
    %v532 = vmax.f32 %v294, 0.0
    %v533 = vmax.f32 %v299, 0.0
    %v534 = vmax.f32 %v304, 0.0
    %v535 = vmax.f32 %v309, 0.0
    %v536 = vmax.f32 %v314, 0.0
    %v537 = vmax.f32 %v319, 0.0
    %v538 = vmax.f32 %v324, 0.0
    %v539 = vmax.f32 %v329, 0.0
    %v540 = vmax.f32 %v334, 0.0
    %v541 = vmax.f32 %v339, 0.0
    %v542 = vmax.f32 %v344, 0.0
    %v543 = vmax.f32 %v349, 0.0
    %v544 = vmax.f32 %v354, 0.0
    %v545 = vmax.f32 %v359, 0.0
    %v546 = vmax.f32 %v364, 0.0
    %v547 = vmax.f32 %v369, 0.0
    %v548 = vmax.f32 %v374, 0.0
    %v549 = vmax.f32 %v379, 0.0
    %v550 = vmax.f32 %v384, 0.0
    %v551 = vmax.f32 %v389, 0.0
    %v552 = vmax.f32 %v394, 0.0
    %v553 = vmax.f32 %v399, 0.0
    %v554 = vmax.f32 %v404, 0.0
    %v555 = vmax.f32 %v409, 0.0
    %v556 = vmax.f32 %v414, 0.0
    %v557 = vmax.f32 %v419, 0.0
    %v558 = vmax.f32 %v424, 0.0
    %v559 = vmax.f32 %v429, 0.0
    %v560 = vmax.f32 %v434, 0.0
    %v561 = vmax.f32 %v439, 0.0
    %v562 = vmax.f32 %v444, 0.0
    %v563 = vmax.f32 %v449, 0.0
    %v564 = vmax.f32 %v454, 0.0
    %v565 = vmax.f32 %v459, 0.0
    %v566 = vmax.f32 %v464, 0.0
    %v567 = vmax.f32 %v469, 0.0
    %v568 = vmax.f32 %v474, 0.0
    %v569 = vmax.f32 %v479, 0.0
    %v570 = vmax.f32 %v484, 0.0
    %v571 = vmax.f32 %v489, 0.0
    %v572 = vmax.f32 %v494, 0.0
    %v573 = vmax.f32 %v499, 0.0
    %v574 = vmax.f32 %v504, 0.0
    %v575 = vmax.f32 %v509, 0.0
    %v576 = vmax.f32 %v514, 0.0
    %v577 = vmax.f32 %v519, 0.0
    %v578 = vmax.f32 %v524, 0.0
    %v579 = vmax.f32 %v529, 0.0
    %v580 = vld [vmem:[%s3] sm:$0xff]
    %v581 = vld [vmem:[%s3 + $0x8] sm:$0xff]
    %v582 = vld [vmem:[%s3 + $0x10] sm:$0xff]
    %v583 = vld [vmem:[%s3 + $0x18] sm:$0xff]
    %v584 = vld [vmem:[%s3 + $0x20] sm:$0x3f]
    %v585 = vld [vmem:[%s4] sm:$0x1]
    %v587 = vlaneseq
    %v588 = vshrl.u32 %v587, 7
    %v589 = vsub.s32 0, %v588
    %v590 = vrot.slane %v585, %v589
    %vm592 = vcmask 310272
    %v594 = vsel %vm592, %v532, 0
    %v597 = vsel %vm592, %v533, 0
    %v600 = vsel %vm592, %v534, 0
    %v603 = vsel %vm592, %v535, 0
    %v606 = vsel %vm592, %v536, 0
    %v609 = vsel %vm592, %v537, 0
    %v612 = vsel %vm592, %v538, 0
    %v615 = vsel %vm592, %v539, 0
    %v618 = vsel %vm592, %v540, 0
    %v621 = vsel %vm592, %v541, 0
    %v624 = vsel %vm592, %v542, 0
    %v627 = vsel %vm592, %v543, 0
    %v630 = vsel %vm592, %v544, 0
    %v633 = vsel %vm592, %v545, 0
    %v636 = vsel %vm592, %v546, 0
    %v639 = vsel %vm592, %v547, 0
    %v642 = vsel %vm592, %v548, 0
    %v645 = vsel %vm592, %v549, 0
    %v648 = vsel %vm592, %v550, 0
    %v651 = vsel %vm592, %v551, 0
    %v654 = vsel %vm592, %v552, 0
    %v657 = vsel %vm592, %v553, 0
    %v660 = vsel %vm592, %v554, 0
    %v663 = vsel %vm592, %v555, 0
    %v666 = vsel %vm592, %v556, 0
    %v669 = vsel %vm592, %v557, 0
    %v672 = vsel %vm592, %v558, 0
    %v675 = vsel %vm592, %v559, 0
    %v678 = vsel %vm592, %v560, 0
    %v681 = vsel %vm592, %v561, 0
    %v684 = vsel %vm592, %v562, 0
    %v687 = vsel %vm592, %v563, 0
    %v690 = vsel %vm592, %v564, 0
    %v693 = vsel %vm592, %v565, 0
    %v696 = vsel %vm592, %v566, 0
    %v699 = vsel %vm592, %v567, 0
    %v702 = vsel %vm592, %v568, 0
    %v705 = vsel %vm592, %v569, 0
    %v708 = vsel %vm592, %v570, 0
    %v711 = vsel %vm592, %v571, 0
    %v714 = vsel %vm592, %v572, 0
    %v717 = vsel %vm592, %v573, 0
    %v720 = vsel %vm592, %v574, 0
    %v723 = vsel %vm592, %v575, 0
    %v726 = vsel %vm592, %v576, 0
    %v729 = vsel %vm592, %v577, 0
    %v732 = vsel %vm592, %v578, 0
    %v735 = vsel %vm592, %v579, 0
    %vm737 = vcmask 1045504
    %v739 = vsel %vm737, %v584, 0
    %741 = vmatprep.subr.mxu0 0.0
    %742 = vmatpush1.msra.mxu0 %v580
    %743 = vmatprep.subr.mxu0 0.0
    %744 = vmatpush1.msra.mxu0 %v581
    %745 = vmatprep.subr.mxu0 0.0
    %746 = vmatpush1.msra.mxu0 %v582
    %747 = vmatprep.subr.mxu0 0.0
    %748 = vmatpush1.msra.mxu0 %v583
    %749 = vmatprep.subr.mxu0 0.0
    %750 = vmatpush1.msra.mxu0 %v739
    %751 = vmatprep.subr.mxu0 0.0
    %752 = vmatpush1.msra.mxu0 0.0
    %753 = vmatprep.subr.mxu0 0.0
    %754 = vmatpush1.msra.mxu0 0.0
    %755 = vmatprep.subr.mxu0 0.0
    %756 = vmatpush1.msra.mxu0 0.0
    %757 = vmatprep.subr.mxu0 0.0
    %758 = vmatpush1.msra.mxu0 0.0
    %759 = vmatprep.subr.mxu0 0.0
    %760 = vmatpush1.msra.mxu0 0.0
    %761 = vmatprep.subr.mxu0 0.0
    %762 = vmatpush1.msra.mxu0 0.0
    %763 = vmatprep.subr.mxu0 0.0
    %764 = vmatpush1.msra.mxu0 0.0
    %765 = vmatprep.subr.mxu0 0.0
    %766 = vmatpush1.msra.mxu0 0.0
    %767 = vmatprep.subr.mxu0 0.0
    %768 = vmatpush1.msra.mxu0 0.0
    %769 = vmatprep.subr.mxu0 0.0
    %770 = vmatpush1.msra.mxu0 0.0
    %771 = vmatprep.subr.mxu0 0.0
    %772 = vmatpush1.msra.mxu0 0.0
    %773 = vmatprep.subr.mxu0 0.0
    %774 = vmatpush1.msra.mxu0 0.0
    %775 = vmatprep.subr.mxu0 0.0
    %776 = vmatpush1.msra.mxu0 0.0
    %777 = vmatprep.subr.mxu0 0.0
    %778 = vmatpush1.msra.mxu0 0.0
    %779 = vmatprep.subr.mxu0 0.0
    %780 = vmatpush1.msra.mxu0 0.0
    %781 = vmatprep.subr.mxu0 0.0
    %782 = vmatpush1.msra.mxu0 0.0
    %783 = vmatprep.subr.mxu0 0.0
    %784 = vmatpush1.msra.mxu0 0.0
    %785 = vmatprep.subr.mxu0 0.0
    %786 = vmatpush1.msra.mxu0 0.0
    %787 = vmatprep.subr.mxu0 0.0
    %788 = vmatpush1.msra.mxu0 0.0
    %789 = vmatprep.subr.mxu0 0.0
    %790 = vmatpush1.msra.mxu0 0.0
    %791 = vmatprep.subr.mxu0 0.0
    %792 = vmatpush1.msra.mxu0 0.0
    %793 = vmatprep.subr.mxu0 0.0
    %794 = vmatpush1.msra.mxu0 0.0
    %795 = vmatprep.subr.mxu0 0.0
    %796 = vmatpush1.msra.mxu0 0.0
    %797 = vmatprep.subr.mxu0 0.0
    %798 = vmatpush1.msra.mxu0 0.0
    %799 = vmatprep.subr.mxu0 0.0
    %800 = vmatpush1.msra.mxu0 0.0
    %801 = vmatprep.subr.mxu0 0.0
    %802 = vmatpush1.msra.mxu0 0.0
    %803 = vmatprep.subr.mxu0 0.0
    %804 = vmatpush1.msra.mxu0 0.0
    %805 = vmatprep.mubr.f32.mxu0 0.0
    %806 = vmatmul.mubr.f32.gmra.mrb[0].mxu0 %v594
    %v807 = vpop.f32.mrb[0].mxu0
    %v808 = vadd.f32 %v590, %v807
    %v809 = vpop.f32.mrb[0].mxu0
    %810 = vmatprep.mubr.f32.mxu0 0.0
    %811 = vmatmul.mubr.f32.gmra.mrb[0].mxu0 %v597
    %v812 = vpop.f32.mrb[0].mxu0
    %v813 = vadd.f32 %v590, %v812
    %v814 = vpop.f32.mrb[0].mxu0
    %815 = vmatprep.mubr.f32.mxu0 0.0
    %816 = vmatmul.mubr.f32.gmra.mrb[0].mxu0 %v600
    %v817 = vpop.f32.mrb[0].mxu0
    %v818 = vadd.f32 %v590, %v817
    %v819 = vpop.f32.mrb[0].mxu0
    %820 = vmatprep.mubr.f32.mxu0 0.0
    %821 = vmatmul.mubr.f32.gmra.mrb[0].mxu0 %v603
    %v822 = vpop.f32.mrb[0].mxu0
    %v823 = vadd.f32 %v590, %v822
    %v824 = vpop.f32.mrb[0].mxu0
    %825 = vmatprep.mubr.f32.mxu0 0.0
    %826 = vmatmul.mubr.f32.gmra.mrb[0].mxu0 %v606
    %v827 = vpop.f32.mrb[0].mxu0
    %v828 = vadd.f32 %v590, %v827
    %v829 = vpop.f32.mrb[0].mxu0
    %830 = vmatprep.mubr.f32.mxu0 0.0
    %831 = vmatmul.mubr.f32.gmra.mrb[0].mxu0 %v609
    %v832 = vpop.f32.mrb[0].mxu0
    %v833 = vadd.f32 %v590, %v832
    %v834 = vpop.f32.mrb[0].mxu0
    %835 = vmatprep.mubr.f32.mxu0 0.0
    %836 = vmatmul.mubr.f32.gmra.mrb[0].mxu0 %v612
    %v837 = vpop.f32.mrb[0].mxu0
    %v838 = vadd.f32 %v590, %v837
    %v839 = vpop.f32.mrb[0].mxu0
    %840 = vmatprep.mubr.f32.mxu0 0.0
    %841 = vmatmul.mubr.f32.gmra.mrb[0].mxu0 %v615
    %v842 = vpop.f32.mrb[0].mxu0
    %v843 = vadd.f32 %v590, %v842
    %v844 = vpop.f32.mrb[0].mxu0
    %845 = vmatprep.mubr.f32.mxu0 0.0
    %846 = vmatmul.mubr.f32.gmra.mrb[0].mxu0 %v618
    %v847 = vpop.f32.mrb[0].mxu0
    %v848 = vadd.f32 %v590, %v847
    %v849 = vpop.f32.mrb[0].mxu0
    %850 = vmatprep.mubr.f32.mxu0 0.0
    %851 = vmatmul.mubr.f32.gmra.mrb[0].mxu0 %v621
    %v852 = vpop.f32.mrb[0].mxu0
    %v853 = vadd.f32 %v590, %v852
    %v854 = vpop.f32.mrb[0].mxu0
    %855 = vmatprep.mubr.f32.mxu0 0.0
    %856 = vmatmul.mubr.f32.gmra.mrb[0].mxu0 %v624
    %v857 = vpop.f32.mrb[0].mxu0
    %v858 = vadd.f32 %v590, %v857
    %v859 = vpop.f32.mrb[0].mxu0
    %860 = vmatprep.mubr.f32.mxu0 0.0
    %861 = vmatmul.mubr.f32.gmra.mrb[0].mxu0 %v627
    %v862 = vpop.f32.mrb[0].mxu0
    %v863 = vadd.f32 %v590, %v862
    %v864 = vpop.f32.mrb[0].mxu0
    %865 = vmatprep.mubr.f32.mxu0 0.0
    %866 = vmatmul.mubr.f32.gmra.mrb[0].mxu0 %v630
    %v867 = vpop.f32.mrb[0].mxu0
    %v868 = vadd.f32 %v590, %v867
    %v869 = vpop.f32.mrb[0].mxu0
    %870 = vmatprep.mubr.f32.mxu0 0.0
    %871 = vmatmul.mubr.f32.gmra.mrb[0].mxu0 %v633
    %v872 = vpop.f32.mrb[0].mxu0
    %v873 = vadd.f32 %v590, %v872
    %v874 = vpop.f32.mrb[0].mxu0
    %875 = vmatprep.mubr.f32.mxu0 0.0
    %876 = vmatmul.mubr.f32.gmra.mrb[0].mxu0 %v636
    %v877 = vpop.f32.mrb[0].mxu0
    %v878 = vadd.f32 %v590, %v877
    %v879 = vpop.f32.mrb[0].mxu0
    %880 = vmatprep.mubr.f32.mxu0 0.0
    %881 = vmatmul.mubr.f32.gmra.mrb[0].mxu0 %v639
    %v882 = vpop.f32.mrb[0].mxu0
    %v883 = vadd.f32 %v590, %v882
    %v884 = vpop.f32.mrb[0].mxu0
    %885 = vmatprep.mubr.f32.mxu0 0.0
    %886 = vmatmul.mubr.f32.gmra.mrb[0].mxu0 %v642
    %v887 = vpop.f32.mrb[0].mxu0
    %v888 = vadd.f32 %v590, %v887
    %v889 = vpop.f32.mrb[0].mxu0
    %890 = vmatprep.mubr.f32.mxu0 0.0
    %891 = vmatmul.mubr.f32.gmra.mrb[0].mxu0 %v645
    %v892 = vpop.f32.mrb[0].mxu0
    %v893 = vadd.f32 %v590, %v892
    %v894 = vpop.f32.mrb[0].mxu0
    %895 = vmatprep.mubr.f32.mxu0 0.0
    %896 = vmatmul.mubr.f32.gmra.mrb[0].mxu0 %v648
    %v897 = vpop.f32.mrb[0].mxu0
    %v898 = vadd.f32 %v590, %v897
    %v899 = vpop.f32.mrb[0].mxu0
    %900 = vmatprep.mubr.f32.mxu0 0.0
    %901 = vmatmul.mubr.f32.gmra.mrb[0].mxu0 %v651
    %v902 = vpop.f32.mrb[0].mxu0
    %v903 = vadd.f32 %v590, %v902
    %v904 = vpop.f32.mrb[0].mxu0
    %905 = vmatprep.mubr.f32.mxu0 0.0
    %906 = vmatmul.mubr.f32.gmra.mrb[0].mxu0 %v654
    %v907 = vpop.f32.mrb[0].mxu0
    %v908 = vadd.f32 %v590, %v907
    %v909 = vpop.f32.mrb[0].mxu0
    %910 = vmatprep.mubr.f32.mxu0 0.0
    %911 = vmatmul.mubr.f32.gmra.mrb[0].mxu0 %v657
    %v912 = vpop.f32.mrb[0].mxu0
    %v913 = vadd.f32 %v590, %v912
    %v914 = vpop.f32.mrb[0].mxu0
    %915 = vmatprep.mubr.f32.mxu0 0.0
    %916 = vmatmul.mubr.f32.gmra.mrb[0].mxu0 %v660
    %v917 = vpop.f32.mrb[0].mxu0
    %v918 = vadd.f32 %v590, %v917
    %v919 = vpop.f32.mrb[0].mxu0
    %920 = vmatprep.mubr.f32.mxu0 0.0
    %921 = vmatmul.mubr.f32.gmra.mrb[0].mxu0 %v663
    %v922 = vpop.f32.mrb[0].mxu0
    %v923 = vadd.f32 %v590, %v922
    %v924 = vpop.f32.mrb[0].mxu0
    %925 = vmatprep.mubr.f32.mxu0 0.0
    %926 = vmatmul.mubr.f32.gmra.mrb[0].mxu0 %v666
    %v927 = vpop.f32.mrb[0].mxu0
    %v928 = vadd.f32 %v590, %v927
    %v929 = vpop.f32.mrb[0].mxu0
    %930 = vmatprep.mubr.f32.mxu0 0.0
    %931 = vmatmul.mubr.f32.gmra.mrb[0].mxu0 %v669
    %v932 = vpop.f32.mrb[0].mxu0
    %v933 = vadd.f32 %v590, %v932
    %v934 = vpop.f32.mrb[0].mxu0
    %935 = vmatprep.mubr.f32.mxu0 0.0
    %936 = vmatmul.mubr.f32.gmra.mrb[0].mxu0 %v672
    %v937 = vpop.f32.mrb[0].mxu0
    %v938 = vadd.f32 %v590, %v937
    %v939 = vpop.f32.mrb[0].mxu0
    %940 = vmatprep.mubr.f32.mxu0 0.0
    %941 = vmatmul.mubr.f32.gmra.mrb[0].mxu0 %v675
    %v942 = vpop.f32.mrb[0].mxu0
    %v943 = vadd.f32 %v590, %v942
    %v944 = vpop.f32.mrb[0].mxu0
    %945 = vmatprep.mubr.f32.mxu0 0.0
    %946 = vmatmul.mubr.f32.gmra.mrb[0].mxu0 %v678
    %v947 = vpop.f32.mrb[0].mxu0
    %v948 = vadd.f32 %v590, %v947
    %v949 = vpop.f32.mrb[0].mxu0
    %950 = vmatprep.mubr.f32.mxu0 0.0
    %951 = vmatmul.mubr.f32.gmra.mrb[0].mxu0 %v681
    %v952 = vpop.f32.mrb[0].mxu0
    %v953 = vadd.f32 %v590, %v952
    %v954 = vpop.f32.mrb[0].mxu0
    %955 = vmatprep.mubr.f32.mxu0 0.0
    %956 = vmatmul.mubr.f32.gmra.mrb[0].mxu0 %v684
    %v957 = vpop.f32.mrb[0].mxu0
    %v958 = vadd.f32 %v590, %v957
    %v959 = vpop.f32.mrb[0].mxu0
    %960 = vmatprep.mubr.f32.mxu0 0.0
    %961 = vmatmul.mubr.f32.gmra.mrb[0].mxu0 %v687
    %v962 = vpop.f32.mrb[0].mxu0
    %v963 = vadd.f32 %v590, %v962
    %v964 = vpop.f32.mrb[0].mxu0
    %965 = vmatprep.mubr.f32.mxu0 0.0
    %966 = vmatmul.mubr.f32.gmra.mrb[0].mxu0 %v690
    %v967 = vpop.f32.mrb[0].mxu0
    %v968 = vadd.f32 %v590, %v967
    %v969 = vpop.f32.mrb[0].mxu0
    %970 = vmatprep.mubr.f32.mxu0 0.0
    %971 = vmatmul.mubr.f32.gmra.mrb[0].mxu0 %v693
    %v972 = vpop.f32.mrb[0].mxu0
    %v973 = vadd.f32 %v590, %v972
    %v974 = vpop.f32.mrb[0].mxu0
    %975 = vmatprep.mubr.f32.mxu0 0.0
    %976 = vmatmul.mubr.f32.gmra.mrb[0].mxu0 %v696
    %v977 = vpop.f32.mrb[0].mxu0
    %v978 = vadd.f32 %v590, %v977
    %v979 = vpop.f32.mrb[0].mxu0
    %980 = vmatprep.mubr.f32.mxu0 0.0
    %981 = vmatmul.mubr.f32.gmra.mrb[0].mxu0 %v699
    %v982 = vpop.f32.mrb[0].mxu0
    %v983 = vadd.f32 %v590, %v982
    %v984 = vpop.f32.mrb[0].mxu0
    %985 = vmatprep.mubr.f32.mxu0 0.0
    %986 = vmatmul.mubr.f32.gmra.mrb[0].mxu0 %v702
    %v987 = vpop.f32.mrb[0].mxu0
    %v988 = vadd.f32 %v590, %v987
    %v989 = vpop.f32.mrb[0].mxu0
    %990 = vmatprep.mubr.f32.mxu0 0.0
    %991 = vmatmul.mubr.f32.gmra.mrb[0].mxu0 %v705
    %v992 = vpop.f32.mrb[0].mxu0
    %v993 = vadd.f32 %v590, %v992
    %v994 = vpop.f32.mrb[0].mxu0
    %995 = vmatprep.mubr.f32.mxu0 0.0
    %996 = vmatmul.mubr.f32.gmra.mrb[0].mxu0 %v708
    %v997 = vpop.f32.mrb[0].mxu0
    %v998 = vadd.f32 %v590, %v997
    %v999 = vpop.f32.mrb[0].mxu0
    %1000 = vmatprep.mubr.f32.mxu0 0.0
    %1001 = vmatmul.mubr.f32.gmra.mrb[0].mxu0 %v711
    %v1002 = vpop.f32.mrb[0].mxu0
    %v1003 = vadd.f32 %v590, %v1002
    %v1004 = vpop.f32.mrb[0].mxu0
    %1005 = vmatprep.mubr.f32.mxu0 0.0
    %1006 = vmatmul.mubr.f32.gmra.mrb[0].mxu0 %v714
    %v1007 = vpop.f32.mrb[0].mxu0
    %v1008 = vadd.f32 %v590, %v1007
    %v1009 = vpop.f32.mrb[0].mxu0
    %1010 = vmatprep.mubr.f32.mxu0 0.0
    %1011 = vmatmul.mubr.f32.gmra.mrb[0].mxu0 %v717
    %v1012 = vpop.f32.mrb[0].mxu0
    %v1013 = vadd.f32 %v590, %v1012
    %v1014 = vpop.f32.mrb[0].mxu0
    %1015 = vmatprep.mubr.f32.mxu0 0.0
    %1016 = vmatmul.mubr.f32.gmra.mrb[0].mxu0 %v720
    %v1017 = vpop.f32.mrb[0].mxu0
    %v1018 = vadd.f32 %v590, %v1017
    %v1019 = vpop.f32.mrb[0].mxu0
    %1020 = vmatprep.mubr.f32.mxu0 0.0
    %1021 = vmatmul.mubr.f32.gmra.mrb[0].mxu0 %v723
    %v1022 = vpop.f32.mrb[0].mxu0
    %v1023 = vadd.f32 %v590, %v1022
    %v1024 = vpop.f32.mrb[0].mxu0
    %1025 = vmatprep.mubr.f32.mxu0 0.0
    %1026 = vmatmul.mubr.f32.gmra.mrb[0].mxu0 %v726
    %v1027 = vpop.f32.mrb[0].mxu0
    %v1028 = vadd.f32 %v590, %v1027
    %v1029 = vpop.f32.mrb[0].mxu0
    %1030 = vmatprep.mubr.f32.mxu0 0.0
    %1031 = vmatmul.mubr.f32.gmra.mrb[0].mxu0 %v729
    %v1032 = vpop.f32.mrb[0].mxu0
    %v1033 = vadd.f32 %v590, %v1032
    %v1034 = vpop.f32.mrb[0].mxu0
    %1035 = vmatprep.mubr.f32.mxu0 0.0
    %1036 = vmatmul.mubr.f32.gmra.mrb[0].mxu0 %v732
    %v1037 = vpop.f32.mrb[0].mxu0
    %v1038 = vadd.f32 %v590, %v1037
    %v1039 = vpop.f32.mrb[0].mxu0
    %1040 = vmatprep.mubr.f32.mxu0 0.0
    %1041 = vmatmul.mubr.f32.gmra.mrb[0].mxu0 %v735
    %v1042 = vpop.f32.mrb[0].mxu0
    %v1043 = vadd.f32 %v590, %v1042
    %v1044 = vpop.f32.mrb[0].mxu0
    %1045 = vdwg.mxu0
    %1046 = vst.msk [vmem:[#allocation2] sm:$0xff] %vm78, %v808
    %1047 = vst.msk [vmem:[#allocation2 + $0x8] sm:$0xff] %vm78, %v813
    %1048 = vst.msk [vmem:[#allocation2 + $0x10] sm:$0xff] %vm78, %v818
    %1049 = vst.msk [vmem:[#allocation2 + $0x18] sm:$0xff] %vm78, %v823
    %1050 = vst.msk [vmem:[#allocation2 + $0x20] sm:$0xff] %vm78, %v828
    %1051 = vst.msk [vmem:[#allocation2 + $0x28] sm:$0xff] %vm78, %v833
    %1052 = vst.msk [vmem:[#allocation2 + $0x30] sm:$0xff] %vm78, %v838
    %1053 = vst.msk [vmem:[#allocation2 + $0x38] sm:$0xff] %vm78, %v843
    %1054 = vst.msk [vmem:[#allocation2 + $0x40] sm:$0xff] %vm78, %v848
    %1055 = vst.msk [vmem:[#allocation2 + $0x48] sm:$0xff] %vm78, %v853
    %1056 = vst.msk [vmem:[#allocation2 + $0x50] sm:$0xff] %vm78, %v858
    %1057 = vst.msk [vmem:[#allocation2 + $0x58] sm:$0xff] %vm78, %v863
    %1058 = vst.msk [vmem:[#allocation2 + $0x60] sm:$0xff] %vm78, %v868
    %1059 = vst.msk [vmem:[#allocation2 + $0x68] sm:$0xff] %vm78, %v873
    %1060 = vst.msk [vmem:[#allocation2 + $0x70] sm:$0xff] %vm78, %v878
    %1061 = vst.msk [vmem:[#allocation2 + $0x78] sm:$0xff] %vm78, %v883
    %1062 = vst.msk [vmem:[#allocation2 + $0x80] sm:$0xff] %vm78, %v888
    %1063 = vst.msk [vmem:[#allocation2 + $0x88] sm:$0xff] %vm78, %v893
    %1064 = vst.msk [vmem:[#allocation2 + $0x90] sm:$0xff] %vm78, %v898
    %1065 = vst.msk [vmem:[#allocation2 + $0x98] sm:$0xff] %vm78, %v903
    %1066 = vst.msk [vmem:[#allocation2 + $0xa0] sm:$0xff] %vm78, %v908
    %1067 = vst.msk [vmem:[#allocation2 + $0xa8] sm:$0xff] %vm78, %v913
    %1068 = vst.msk [vmem:[#allocation2 + $0xb0] sm:$0xff] %vm78, %v918
    %1069 = vst.msk [vmem:[#allocation2 + $0xb8] sm:$0xff] %vm78, %v923
    %1070 = vst.msk [vmem:[#allocation2 + $0xc0] sm:$0xff] %vm78, %v928
    %1071 = vst.msk [vmem:[#allocation2 + $0xc8] sm:$0xff] %vm78, %v933
    %1072 = vst.msk [vmem:[#allocation2 + $0xd0] sm:$0xff] %vm78, %v938
    %1073 = vst.msk [vmem:[#allocation2 + $0xd8] sm:$0xff] %vm78, %v943
    %1074 = vst.msk [vmem:[#allocation2 + $0xe0] sm:$0xff] %vm78, %v948
    %1075 = vst.msk [vmem:[#allocation2 + $0xe8] sm:$0xff] %vm78, %v953
    %1076 = vst.msk [vmem:[#allocation2 + $0xf0] sm:$0xff] %vm78, %v958
    %1077 = vst.msk [vmem:[#allocation2 + $0xf8] sm:$0xff] %vm78, %v963
    %1078 = vst.msk [vmem:[#allocation2 + $0x100] sm:$0xff] %vm78, %v968
    %1079 = vst.msk [vmem:[#allocation2 + $0x108] sm:$0xff] %vm78, %v973
    %1080 = vst.msk [vmem:[#allocation2 + $0x110] sm:$0xff] %vm78, %v978
    %1081 = vst.msk [vmem:[#allocation2 + $0x118] sm:$0xff] %vm78, %v983
    %1082 = vst.msk [vmem:[#allocation2 + $0x120] sm:$0xff] %vm78, %v988
    %1083 = vst.msk [vmem:[#allocation2 + $0x128] sm:$0xff] %vm78, %v993
    %1084 = vst.msk [vmem:[#allocation2 + $0x130] sm:$0xff] %vm78, %v998
    %1085 = vst.msk [vmem:[#allocation2 + $0x138] sm:$0xff] %vm78, %v1003
    %1086 = vst.msk [vmem:[#allocation2 + $0x140] sm:$0xff] %vm78, %v1008
    %1087 = vst.msk [vmem:[#allocation2 + $0x148] sm:$0xff] %vm78, %v1013
    %1088 = vst.msk [vmem:[#allocation2 + $0x150] sm:$0xff] %vm78, %v1018
    %1089 = vst.msk [vmem:[#allocation2 + $0x158] sm:$0xff] %vm78, %v1023
    %1090 = vst.msk [vmem:[#allocation2 + $0x160] sm:$0xff] %vm78, %v1028
    %1091 = vst.msk [vmem:[#allocation2 + $0x168] sm:$0xff] %vm78, %v1033
    %1092 = vst.msk [vmem:[#allocation2 + $0x170] sm:$0xff] %vm78, %v1038
    %1093 = vst.msk [vmem:[#allocation2 + $0x178] sm:$0xff] %vm78, %v1043
    // Predicated region
    $region22: #{segmentation_nn.1} parent=1 // pred_check
      _
    $region23: #{segmentation_nn.1} parent=1 // pred_check_branch
      %1095 = sbr.rel (0) target = $region25
    $region24: #{segmentation_nn.1} parent=1 // pred_region
      // Predicated region
      $region26: #{segmentation_nn.1} parent=24 // pred_check
        _
      $region27: #{segmentation_nn.1} parent=24 // pred_check_branch
        %1097 = sbr.rel (0) target = $region29
      $region28: #{segmentation_nn.1} parent=24 // pred_region
        // Predicated region
        $region30: #{segmentation_nn.1} parent=28 // pred_check
          _
        $region31: #{segmentation_nn.1} parent=28 // pred_check_branch
          %1099 = sbr.rel (0) target = $region33
        $region32: #{segmentation_nn.1} parent=28 // pred_region
          // Predicated region
          $region45: #{segmentation_nn.1} parent=32 // pred_check
            _
          $region46: #{segmentation_nn.1} parent=32 // pred_check_branch
            %1188 = sbr.rel (0) target = $region48
          $region47: #{segmentation_nn.1} parent=32 // pred_region
            loop: start=0, step=1, limit=1
            $region49: #{segmentation_nn.1} parent=47 // loop_pre_header
              _
            $region50: #{segmentation_nn.1} parent=47 // loop_header
              %s1190 = sphi 0, %s1194
              %p1191 = scmp.ge.s32.totalorder %s1190, 1
              %s1195 = sphi [#allocation2], [#allocation2]
              %s1196 = sphi %s5, %s5
            $region51: #{segmentation_nn.1} parent=47 // loop_header_branch
              %1193 = sbr.rel (%p1191) target = $region55
            $region52: #{segmentation_nn.1} parent=47 // loop_body
              %v1197 = vld [vmem:[%s1195] sm:$0xff]
              %1198 = vst [vmem:[%s1196] sm:$0xff] %v1197
              %v1199 = vld [vmem:[%s1195 + $0x8] sm:$0xff]
              %1200 = vst [vmem:[%s1196 + $0x8] sm:$0xff] %v1199
              %v1201 = vld [vmem:[%s1195 + $0x10] sm:$0xff]
              %1202 = vst [vmem:[%s1196 + $0x10] sm:$0xff] %v1201
              %v1203 = vld [vmem:[%s1195 + $0x18] sm:$0xff]
              %1204 = vst [vmem:[%s1196 + $0x18] sm:$0xff] %v1203
              %v1205 = vld [vmem:[%s1195 + $0x20] sm:$0xff]
              %1206 = vst [vmem:[%s1196 + $0x20] sm:$0xff] %v1205
              %v1207 = vld [vmem:[%s1195 + $0x28] sm:$0xff]
              %1208 = vst [vmem:[%s1196 + $0x28] sm:$0xff] %v1207
              %v1209 = vld [vmem:[%s1195 + $0x30] sm:$0xff]
              %1210 = vst [vmem:[%s1196 + $0x30] sm:$0xff] %v1209
              %v1211 = vld [vmem:[%s1195 + $0x38] sm:$0xff]
              %1212 = vst [vmem:[%s1196 + $0x38] sm:$0xff] %v1211
              %v1213 = vld [vmem:[%s1195 + $0x40] sm:$0xff]
              %1214 = vst [vmem:[%s1196 + $0x40] sm:$0xff] %v1213
              %v1215 = vld [vmem:[%s1195 + $0x48] sm:$0xff]
              %1216 = vst [vmem:[%s1196 + $0x48] sm:$0xff] %v1215
              %v1217 = vld [vmem:[%s1195 + $0x50] sm:$0xff]
              %1218 = vst [vmem:[%s1196 + $0x50] sm:$0xff] %v1217
              %v1219 = vld [vmem:[%s1195 + $0x58] sm:$0xff]
              %1220 = vst [vmem:[%s1196 + $0x58] sm:$0xff] %v1219
              %v1221 = vld [vmem:[%s1195 + $0x60] sm:$0xff]
              %1222 = vst [vmem:[%s1196 + $0x60] sm:$0xff] %v1221
              %v1223 = vld [vmem:[%s1195 + $0x68] sm:$0xff]
              %1224 = vst [vmem:[%s1196 + $0x68] sm:$0xff] %v1223
              %v1225 = vld [vmem:[%s1195 + $0x70] sm:$0xff]
              %1226 = vst [vmem:[%s1196 + $0x70] sm:$0xff] %v1225
              %v1227 = vld [vmem:[%s1195 + $0x78] sm:$0xff]
              %1228 = vst [vmem:[%s1196 + $0x78] sm:$0xff] %v1227
              %v1229 = vld [vmem:[%s1195 + $0x80] sm:$0xff]
              %1230 = vst [vmem:[%s1196 + $0x80] sm:$0xff] %v1229
              %v1231 = vld [vmem:[%s1195 + $0x88] sm:$0xff]
              %1232 = vst [vmem:[%s1196 + $0x88] sm:$0xff] %v1231
              %v1233 = vld [vmem:[%s1195 + $0x90] sm:$0xff]
              %1234 = vst [vmem:[%s1196 + $0x90] sm:$0xff] %v1233
              %v1235 = vld [vmem:[%s1195 + $0x98] sm:$0xff]
              %1236 = vst [vmem:[%s1196 + $0x98] sm:$0xff] %v1235
              %v1237 = vld [vmem:[%s1195 + $0xa0] sm:$0xff]
              %1238 = vst [vmem:[%s1196 + $0xa0] sm:$0xff] %v1237
              %v1239 = vld [vmem:[%s1195 + $0xa8] sm:$0xff]
              %1240 = vst [vmem:[%s1196 + $0xa8] sm:$0xff] %v1239
              %v1241 = vld [vmem:[%s1195 + $0xb0] sm:$0xff]
              %1242 = vst [vmem:[%s1196 + $0xb0] sm:$0xff] %v1241
              %v1243 = vld [vmem:[%s1195 + $0xb8] sm:$0xff]
              %1244 = vst [vmem:[%s1196 + $0xb8] sm:$0xff] %v1243
              %v1245 = vld [vmem:[%s1195 + $0xc0] sm:$0xff]
              %1246 = vst [vmem:[%s1196 + $0xc0] sm:$0xff] %v1245
              %v1247 = vld [vmem:[%s1195 + $0xc8] sm:$0xff]
              %1248 = vst [vmem:[%s1196 + $0xc8] sm:$0xff] %v1247
              %v1249 = vld [vmem:[%s1195 + $0xd0] sm:$0xff]
              %1250 = vst [vmem:[%s1196 + $0xd0] sm:$0xff] %v1249
              %v1251 = vld [vmem:[%s1195 + $0xd8] sm:$0xff]
              %1252 = vst [vmem:[%s1196 + $0xd8] sm:$0xff] %v1251
              %v1253 = vld [vmem:[%s1195 + $0xe0] sm:$0xff]
              %1254 = vst [vmem:[%s1196 + $0xe0] sm:$0xff] %v1253
              %v1255 = vld [vmem:[%s1195 + $0xe8] sm:$0xff]
              %1256 = vst [vmem:[%s1196 + $0xe8] sm:$0xff] %v1255
              %v1257 = vld [vmem:[%s1195 + $0xf0] sm:$0xff]
              %1258 = vst [vmem:[%s1196 + $0xf0] sm:$0xff] %v1257
              %v1259 = vld [vmem:[%s1195 + $0xf8] sm:$0xff]
              %1260 = vst [vmem:[%s1196 + $0xf8] sm:$0xff] %v1259
              %v1261 = vld [vmem:[%s1195 + $0x100] sm:$0xff]
              %1262 = vst [vmem:[%s1196 + $0x100] sm:$0xff] %v1261
              %v1263 = vld [vmem:[%s1195 + $0x108] sm:$0xff]
              %1264 = vst [vmem:[%s1196 + $0x108] sm:$0xff] %v1263
              %v1265 = vld [vmem:[%s1195 + $0x110] sm:$0xff]
              %1266 = vst [vmem:[%s1196 + $0x110] sm:$0xff] %v1265
              %v1267 = vld [vmem:[%s1195 + $0x118] sm:$0xff]
              %1268 = vst [vmem:[%s1196 + $0x118] sm:$0xff] %v1267
              %v1269 = vld [vmem:[%s1195 + $0x120] sm:$0xff]
              %1270 = vst [vmem:[%s1196 + $0x120] sm:$0xff] %v1269
              %v1271 = vld [vmem:[%s1195 + $0x128] sm:$0xff]
              %1272 = vst [vmem:[%s1196 + $0x128] sm:$0xff] %v1271
            $region53: #{segmentation_nn.1} parent=47 // loop_footer
              %s1194 = sadd.s32 1, %s1190
            $region54: #{segmentation_nn.1} parent=47 // loop_footer_branch
              %1189 = sbr.rel target = $region50
            $region55: #{segmentation_nn.1} parent=47 // loop_exit
              _
          $region48: #{segmentation_nn.1} parent=32 // pred_fallthru
            _
          // Predicated region
          $region56: #{segmentation_nn.1} parent=32 // pred_check
            _
          $region57: #{segmentation_nn.1} parent=32 // pred_check_branch
            %1274 = sbr.rel target = $region59
          $region58: #{segmentation_nn.1} parent=32 // pred_region
            _
          $region59: #{segmentation_nn.1} parent=32 // pred_fallthru
            _
        $region33: #{segmentation_nn.1} parent=28 // pred_fallthru
          _
        // Predicated region
        $region34: #{segmentation_nn.1} parent=28 // pred_check
          _
        $region35: #{segmentation_nn.1} parent=28 // pred_check_branch
          %1101 = sbr.rel target = $region37
        $region36: #{segmentation_nn.1} parent=28 // pred_region
          loop: start=0, step=1, limit=1
          $region38: #{segmentation_nn.1} parent=36 // loop_pre_header
            _
          $region39: #{segmentation_nn.1} parent=36 // loop_header
            %s1104 = sphi 0, %s1108
            %p1105 = scmp.ge.s32.totalorder %s1104, 1
            %s1109 = sphi [#allocation2], [#allocation2]
            %s1110 = sphi %s5, %s5
          $region40: #{segmentation_nn.1} parent=36 // loop_header_branch
            %1107 = sbr.rel (%p1105) target = $region44
          $region41: #{segmentation_nn.1} parent=36 // loop_body
            %v1111 = vld [vmem:[%s1109] sm:$0xff]
            %1112 = vst [vmem:[%s1110] sm:$0xff] %v1111
            %v1113 = vld [vmem:[%s1109 + $0x8] sm:$0xff]
            %1114 = vst [vmem:[%s1110 + $0x8] sm:$0xff] %v1113
            %v1115 = vld [vmem:[%s1109 + $0x10] sm:$0xff]
            %1116 = vst [vmem:[%s1110 + $0x10] sm:$0xff] %v1115
            %v1117 = vld [vmem:[%s1109 + $0x18] sm:$0xff]
            %1118 = vst [vmem:[%s1110 + $0x18] sm:$0xff] %v1117
            %v1119 = vld [vmem:[%s1109 + $0x20] sm:$0xff]
            %1120 = vst [vmem:[%s1110 + $0x20] sm:$0xff] %v1119
            %v1121 = vld [vmem:[%s1109 + $0x28] sm:$0xff]
            %1122 = vst [vmem:[%s1110 + $0x28] sm:$0xff] %v1121
            %v1123 = vld [vmem:[%s1109 + $0x30] sm:$0xff]
            %1124 = vst [vmem:[%s1110 + $0x30] sm:$0xff] %v1123
            %v1125 = vld [vmem:[%s1109 + $0x38] sm:$0xff]
            %1126 = vst [vmem:[%s1110 + $0x38] sm:$0xff] %v1125
            %v1127 = vld [vmem:[%s1109 + $0x40] sm:$0xff]
            %1128 = vst [vmem:[%s1110 + $0x40] sm:$0xff] %v1127
            %v1129 = vld [vmem:[%s1109 + $0x48] sm:$0xff]
            %1130 = vst [vmem:[%s1110 + $0x48] sm:$0xff] %v1129
            %v1131 = vld [vmem:[%s1109 + $0x50] sm:$0xff]
            %1132 = vst [vmem:[%s1110 + $0x50] sm:$0xff] %v1131
            %v1133 = vld [vmem:[%s1109 + $0x58] sm:$0xff]
            %1134 = vst [vmem:[%s1110 + $0x58] sm:$0xff] %v1133
            %v1135 = vld [vmem:[%s1109 + $0x60] sm:$0xff]
            %1136 = vst [vmem:[%s1110 + $0x60] sm:$0xff] %v1135
            %v1137 = vld [vmem:[%s1109 + $0x68] sm:$0xff]
            %1138 = vst [vmem:[%s1110 + $0x68] sm:$0xff] %v1137
            %v1139 = vld [vmem:[%s1109 + $0x70] sm:$0xff]
            %1140 = vst [vmem:[%s1110 + $0x70] sm:$0xff] %v1139
            %v1141 = vld [vmem:[%s1109 + $0x78] sm:$0xff]
            %1142 = vst [vmem:[%s1110 + $0x78] sm:$0xff] %v1141
            %v1143 = vld [vmem:[%s1109 + $0x80] sm:$0xff]
            %1144 = vst [vmem:[%s1110 + $0x80] sm:$0xff] %v1143
            %v1145 = vld [vmem:[%s1109 + $0x88] sm:$0xff]
            %1146 = vst [vmem:[%s1110 + $0x88] sm:$0xff] %v1145
            %v1147 = vld [vmem:[%s1109 + $0x90] sm:$0xff]
            %1148 = vst [vmem:[%s1110 + $0x90] sm:$0xff] %v1147
            %v1149 = vld [vmem:[%s1109 + $0x98] sm:$0xff]
            %1150 = vst [vmem:[%s1110 + $0x98] sm:$0xff] %v1149
            %v1151 = vld [vmem:[%s1109 + $0xa0] sm:$0xff]
            %1152 = vst [vmem:[%s1110 + $0xa0] sm:$0xff] %v1151
            %v1153 = vld [vmem:[%s1109 + $0xa8] sm:$0xff]
            %1154 = vst [vmem:[%s1110 + $0xa8] sm:$0xff] %v1153
            %v1155 = vld [vmem:[%s1109 + $0xb0] sm:$0xff]
            %1156 = vst [vmem:[%s1110 + $0xb0] sm:$0xff] %v1155
            %v1157 = vld [vmem:[%s1109 + $0xb8] sm:$0xff]
            %1158 = vst [vmem:[%s1110 + $0xb8] sm:$0xff] %v1157
            %v1159 = vld [vmem:[%s1109 + $0xc0] sm:$0xff]
            %1160 = vst [vmem:[%s1110 + $0xc0] sm:$0xff] %v1159
            %v1161 = vld [vmem:[%s1109 + $0xc8] sm:$0xff]
            %1162 = vst [vmem:[%s1110 + $0xc8] sm:$0xff] %v1161
            %v1163 = vld [vmem:[%s1109 + $0xd0] sm:$0xff]
            %1164 = vst [vmem:[%s1110 + $0xd0] sm:$0xff] %v1163
            %v1165 = vld [vmem:[%s1109 + $0xd8] sm:$0xff]
            %1166 = vst [vmem:[%s1110 + $0xd8] sm:$0xff] %v1165
            %v1167 = vld [vmem:[%s1109 + $0xe0] sm:$0xff]
            %1168 = vst [vmem:[%s1110 + $0xe0] sm:$0xff] %v1167
            %v1169 = vld [vmem:[%s1109 + $0xe8] sm:$0xff]
            %1170 = vst [vmem:[%s1110 + $0xe8] sm:$0xff] %v1169
            %v1171 = vld [vmem:[%s1109 + $0xf0] sm:$0xff]
            %1172 = vst [vmem:[%s1110 + $0xf0] sm:$0xff] %v1171
            %v1173 = vld [vmem:[%s1109 + $0xf8] sm:$0xff]
            %1174 = vst [vmem:[%s1110 + $0xf8] sm:$0xff] %v1173
            %v1175 = vld [vmem:[%s1109 + $0x100] sm:$0xff]
            %1176 = vst [vmem:[%s1110 + $0x100] sm:$0xff] %v1175
            %v1177 = vld [vmem:[%s1109 + $0x108] sm:$0xff]
            %1178 = vst [vmem:[%s1110 + $0x108] sm:$0xff] %v1177
            %v1179 = vld [vmem:[%s1109 + $0x110] sm:$0xff]
            %1180 = vst [vmem:[%s1110 + $0x110] sm:$0xff] %v1179
            %v1181 = vld [vmem:[%s1109 + $0x118] sm:$0xff]
            %1182 = vst [vmem:[%s1110 + $0x118] sm:$0xff] %v1181
            %v1183 = vld [vmem:[%s1109 + $0x120] sm:$0xff]
            %1184 = vst [vmem:[%s1110 + $0x120] sm:$0xff] %v1183
            %v1185 = vld [vmem:[%s1109 + $0x128] sm:$0xff]
            %1186 = vst [vmem:[%s1110 + $0x128] sm:$0xff] %v1185
          $region42: #{segmentation_nn.1} parent=36 // loop_footer
            %s1108 = sadd.s32 1, %s1104
          $region43: #{segmentation_nn.1} parent=36 // loop_footer_branch
            %1103 = sbr.rel target = $region39
          $region44: #{segmentation_nn.1} parent=36 // loop_exit
            _
        $region37: #{segmentation_nn.1} parent=28 // pred_fallthru
          _
      $region29: #{segmentation_nn.1} parent=24 // pred_fallthru
        _
      %1275 = vnop
    $region25: #{segmentation_nn.1} parent=1 // pred_fallthru
      _
    // Predicated region
    $region60: #{segmentation_nn.1} parent=1 // pred_check
      _
    $region61: #{segmentation_nn.1} parent=1 // pred_check_branch
      %1277 = sbr.rel (0) target = $region63
    $region62: #{segmentation_nn.1} parent=1 // pred_region
      _
    $region63: #{segmentation_nn.1} parent=1 // pred_fallthru
      _

</llo_original>
